<compile_context>
chip_gen: v6e
topology: v6e:2x2x1
jax: 0.10.0
libtpu: 0.0.40
codegen_flags: <defaults>
</compile_context>

<pallas_src>
import functools

import jax
import jax.numpy as jnp
from jax import lax
from jax.experimental import pallas as pl
from jax.experimental.pallas import tpu as pltpu

_EPS = 1e-12


def _max_margin_kernel(r_ref, zs_ref, zn_ref, a_ref, out_ref, *,
                       lamb, rows_valid, block_rows, padded):
    i = pl.program_id(0)

    # ---- regularization = || A A^T - I ||_F  (batch-independent: run once) ----
    @pl.when(i == 0)
    def _init():
        a = a_ref[...].astype(jnp.float32)                               # (K, D)
        k = a_ref.shape[0]
        gram = lax.dot_general(a, a, (((1,), (1,)), ((), ())),
                               preferred_element_type=jnp.float32)       # (K, K)
        rows = lax.broadcasted_iota(jnp.int32, (k, k), 0)
        cols = lax.broadcasted_iota(jnp.int32, (k, k), 1)
        diff = gram - jnp.where(rows == cols, jnp.float32(1.0), jnp.float32(0.0))
        reg = jnp.sqrt(jnp.sum(diff * diff))
        out_ref[0, 0] = jnp.float32(lamb) * reg

    # ---- per-tile hinge term (compute in f32 regardless of source dtype) ----
    r = r_ref[...].astype(jnp.float32)        # (TB, D)
    zs = zs_ref[...].astype(jnp.float32)      # (TB, D)
    zn = zn_ref[...].astype(jnp.float32)      # (TB, N, D)

    # F.normalize(dim=1) on the original (B, 1, D) tensors: size-1 axis ->
    # elementwise x / max(|x|, eps).
    r_n = r / jnp.maximum(jnp.abs(r), _EPS)
    zs_n = zs / jnp.maximum(jnp.abs(zs), _EPS)
    pos = jnp.sum(r_n * zs_n, axis=1, keepdims=True)                     # (TB, 1)

    # F.normalize(dim=1) on the squeezed (B, N, D) negatives: l2 norm over N,
    # folded into r instead of dividing the full (TB, N, D) tensor.
    s2 = jnp.sum(zn * zn, axis=1)                                        # (TB, D)
    inv = 1.0 / jnp.maximum(jnp.sqrt(s2), _EPS)                          # (TB, D)
    r_scaled = r_n * inv                                                 # (TB, D)
    neg = jnp.sum(r_scaled[:, None, :] * zn, axis=2)                     # (TB, N)

    hinge = jnp.maximum(1.0 - pos + neg, 0.0)                            # relu
    if padded:
        n = zn_ref.shape[1]
        row_ids = i * block_rows + lax.broadcasted_iota(
            jnp.int32, (block_rows, n), 0)
        hinge = jnp.where(row_ids < rows_valid, hinge, 0.0)

    out_ref[0, 0] += jnp.sum(hinge)


def max_margin_loss(r_s, z_s, z_n, aspect_matrix, lamb=10.0, block_rows=None):
    """r_s, z_s: (B, 1, D); z_n: (B, N, 1, D); aspect_matrix: (K, D)."""
    B, _, D = r_s.shape
    N = z_n.shape[1]
    K = aspect_matrix.shape[0]

    # glue: squeeze singleton axes (pure reshapes, no compute, no dtype change —
    # narrow inputs stay narrow over the HBM->VMEM DMA).
    r2 = jnp.reshape(r_s, (B, D))
    zs2 = jnp.reshape(z_s, (B, D))
    zn3 = jnp.reshape(z_n, (B, N, D))

    # Pick a batch tile so one z_n block stays ~<= 2 MiB (double-buffered by the
    # pipeline), rounded to a multiple of 8 sublanes.
    itemsize = jnp.dtype(zn3.dtype).itemsize
    if block_rows is None:
        tb = (2 * 1024 * 1024) // max(1, N * D * itemsize)
        tb = max(8, (tb // 8) * 8)
    else:
        tb = max(8, (block_rows // 8) * 8)
    b_ru8 = ((B + 7) // 8) * 8
    tb = min(tb, b_ru8)
    b_pad = ((B + tb - 1) // tb) * tb
    padded = b_pad != B
    if padded:
        r2 = jnp.pad(r2, ((0, b_pad - B), (0, 0)))
        zs2 = jnp.pad(zs2, ((0, b_pad - B), (0, 0)))
        zn3 = jnp.pad(zn3, ((0, b_pad - B), (0, 0), (0, 0)))
    num_tiles = b_pad // tb

    kernel = functools.partial(
        _max_margin_kernel, lamb=float(lamb), rows_valid=B,
        block_rows=tb, padded=padded)

    out = pl.pallas_call(
        kernel,
        out_shape=jax.ShapeDtypeStruct((1, 1), jnp.float32),
        grid=(num_tiles,),
        in_specs=[
            pl.BlockSpec((tb, D), lambda i: (i, 0)),          # r
            pl.BlockSpec((tb, D), lambda i: (i, 0)),          # z_s
            pl.BlockSpec((tb, N, D), lambda i: (i, 0, 0)),    # z_n (streamed)
            pl.BlockSpec((K, D), lambda i: (0, 0)),           # aspect (resident)
        ],
        out_specs=pl.BlockSpec((1, 1), lambda i: (0, 0),
                               memory_space=pltpu.MemorySpace.SMEM),
        compiler_params=pltpu.CompilerParams(
            dimension_semantics=("arbitrary",)),              # output accumulates
    )(r2, zs2, zn3, aspect_matrix)
    return out[0, 0]


def _reference(r_s, z_s, z_n, aspect_matrix, lamb=10.0):
    """Pure-JAX transliteration of the PyTorch forward (float32)."""
    zn = jnp.squeeze(z_n, 2).astype(jnp.float32)                  # (B, N, D)
    r_s = r_s.astype(jnp.float32)
    z_s = z_s.astype(jnp.float32)

    def norm_dim1(x):
        nrm = jnp.sqrt(jnp.sum(x * x, axis=1, keepdims=True))
        return x / jnp.maximum(nrm, _EPS)

    z_s_n = norm_dim1(z_s)
    r_s_n = norm_dim1(r_s)
    zn_n = norm_dim1(zn)
    pos = jnp.sum(r_s_n * z_s_n, axis=2)                          # (B, 1)
    neg = jnp.sum(r_s_n * zn_n, axis=2)                           # (B, N)
    for_max = 1.0 - pos + neg
    loss = jnp.sum(jnp.maximum(for_max, 0.0))
    A = aspect_matrix.astype(jnp.float32)
    reg = jnp.linalg.norm(A @ A.T - jnp.eye(A.shape[0], dtype=jnp.float32))
    return loss + lamb * reg


if __name__ == "__main__":
    B, D, N, K = 2, 32, 8, 4
    key = jax.random.PRNGKey(0)
    k1, k2, k3, k4 = jax.random.split(key, 4)
    r_s = jax.random.normal(k1, (B, 1, D), dtype=jnp.float32)
    z_s = jax.random.normal(k2, (B, 1, D), dtype=jnp.float32)
    z_n = jax.random.normal(k3, (B, N, 1, D), dtype=jnp.float32)
    aspect_matrix = jax.random.normal(k4, (K, D), dtype=jnp.float32)

    loss = max_margin_loss(r_s, z_s, z_n, aspect_matrix, lamb=10.0)
    loss = jax.block_until_ready(loss)

    ref = _reference(r_s, z_s, z_n, aspect_matrix, lamb=10.0)
    assert jnp.isfinite(loss), "kernel produced non-finite loss"
    assert jnp.allclose(loss, ref, rtol=1e-5, atol=1e-5), (loss, ref)
    print("KERNEL_OK")
</pallas_src>

<mosaic_0001>
module attributes {stable_mosaic.version = 11 : i64} {
  func.func @_max_margin_kernel(%arg0: i32, %arg1: memref<8x32xf32, #tpu.memory_space<vmem>>, %arg2: memref<8x32xf32, #tpu.memory_space<vmem>>, %arg3: memref<8x8x32xf32, #tpu.memory_space<vmem>>, %arg4: memref<4x32xf32, #tpu.memory_space<vmem>>, %arg5: memref<1x1xf32, #tpu.memory_space<smem>>) attributes {dimension_semantics = [#tpu.dimension_semantics<arbitrary>], iteration_bounds = array<i64: 1>, scalar_prefetch = 0 : i64, scratch_operands = 0 : i64, tpu.core_type = #tpu.core_type<tc>, window_params = [{transform_indices = @transform_0, window_bounds = array<i64: 8, 32>}, {transform_indices = @transform_1, window_bounds = array<i64: 8, 32>}, {transform_indices = @transform_2, window_bounds = array<i64: 8, 8, 32>}, {pipeline_mode = #tpu.pipeline_mode<synchronous>, transform_indices = @transform_3, window_bounds = array<i64: 4, 32>}, {transform_indices = @transform_4, window_bounds = array<i64: 1, 1>}]} {
    %c0_i32 = arith.constant 0 : i32
    %0 = arith.cmpi eq, %arg0, %c0_i32 : i32
    %1 = arith.extui %0 : i1 to i32
    %c0_i32_0 = arith.constant 0 : i32
    %2 = arith.cmpi ne, %1, %c0_i32_0 : i32
    scf.if %2 {
      %c0_21 = arith.constant 0 : index
      %c0_22 = arith.constant 0 : index
      %50 = vector.load %arg4[%c0_21, %c0_22] : memref<4x32xf32, #tpu.memory_space<vmem>>, vector<4x32xf32>
      %cst_23 = arith.constant dense<0.000000e+00> : vector<4x4xf32>
      %51 = tpu.matmul %50, %50, %cst_23 {dimension_numbers = #tpu.dot_dimension_numbers<[1], [1], [0], [0], [0, 0, 1, 0], [], []>} : vector<4x32xf32>, vector<4x32xf32>, vector<4x4xf32> -> vector<4x4xf32>
      %52 = tpu.iota {dimensions = array<i32: 0>} : vector<4x4xi32>
      %53 = tpu.iota {dimensions = array<i32: 1>} : vector<4x4xi32>
      %54 = arith.cmpi eq, %52, %53 : vector<4x4xi32>
      %cst_24 = arith.constant 1.000000e+00 : f32
      %cst_25 = arith.constant 0.000000e+00 : f32
      %55 = vector.broadcast %cst_24 : f32 to vector<4x4xf32>
      %56 = vector.broadcast %cst_25 : f32 to vector<4x4xf32>
      %57 = arith.select %54, %55, %56 : vector<4x4xi1>, vector<4x4xf32>
      %58 = arith.subf %51, %57 : vector<4x4xf32>
      %59 = arith.mulf %58, %58 : vector<4x4xf32>
      %60 = vector.shape_cast %59 : vector<4x4xf32> to vector<1x4x4xf32>
      %cst_26 = arith.constant dense<0.000000e+00> : vector<1xf32>
      %61 = vector.multi_reduction <add>, %60, %cst_26 [1, 2] : vector<1x4x4xf32> to vector<1xf32>
      %62 = vector.shape_cast %61 : vector<1xf32> to vector<1x1x1xf32>
      %63 = vector.extract %62[0, 0, 0] : f32 from vector<1x1x1xf32>
      %64 = math.sqrt %63 : f32
      %cst_27 = arith.constant 1.000000e+01 : f32
      %65 = arith.mulf %cst_27, %64 : f32
      %c0_28 = arith.constant 0 : index
      %c0_29 = arith.constant 0 : index
      %66 = memref.load %arg5[%c0_28, %c0_29] : memref<1x1xf32, #tpu.memory_space<smem>>
      memref.store %65, %arg5[%c0_28, %c0_29] : memref<1x1xf32, #tpu.memory_space<smem>>
    } else {
    }
    %c0 = arith.constant 0 : index
    %c0_1 = arith.constant 0 : index
    %3 = vector.load %arg1[%c0, %c0_1] : memref<8x32xf32, #tpu.memory_space<vmem>>, vector<8x32xf32>
    %c0_2 = arith.constant 0 : index
    %c0_3 = arith.constant 0 : index
    %4 = vector.load %arg2[%c0_2, %c0_3] : memref<8x32xf32, #tpu.memory_space<vmem>>, vector<8x32xf32>
    %c0_4 = arith.constant 0 : index
    %c0_5 = arith.constant 0 : index
    %c0_6 = arith.constant 0 : index
    %5 = vector.load %arg3[%c0_4, %c0_5, %c0_6] : memref<8x8x32xf32, #tpu.memory_space<vmem>>, vector<8x8x32xf32>
    %6 = math.absf %3 : vector<8x32xf32>
    %cst = arith.constant 9.99999996E-13 : f32
    %7 = vector.broadcast %cst : f32 to vector<8x32xf32>
    %8 = arith.maximumf %6, %7 : vector<8x32xf32>
    %9 = arith.divf %3, %8 : vector<8x32xf32>
    %10 = math.absf %4 : vector<8x32xf32>
    %cst_7 = arith.constant 9.99999996E-13 : f32
    %11 = vector.broadcast %cst_7 : f32 to vector<8x32xf32>
    %12 = arith.maximumf %10, %11 : vector<8x32xf32>
    %13 = arith.divf %4, %12 : vector<8x32xf32>
    %14 = arith.mulf %9, %13 : vector<8x32xf32>
    %cst_8 = arith.constant dense<0.000000e+00> : vector<8xf32>
    %15 = vector.multi_reduction <add>, %14, %cst_8 [1] : vector<8x32xf32> to vector<8xf32>
    %16 = vector.shape_cast %15 : vector<8xf32> to vector<8x1xf32>
    %17 = arith.mulf %5, %5 : vector<8x8x32xf32>
    %cst_9 = arith.constant dense<0.000000e+00> : vector<8x32xf32>
    %18 = vector.multi_reduction <add>, %17, %cst_9 [1] : vector<8x8x32xf32> to vector<8x32xf32>
    %19 = math.sqrt %18 : vector<8x32xf32>
    %cst_10 = arith.constant 9.99999996E-13 : f32
    %20 = vector.broadcast %cst_10 : f32 to vector<8x32xf32>
    %21 = arith.maximumf %19, %20 : vector<8x32xf32>
    %cst_11 = arith.constant 1.000000e+00 : f32
    %22 = vector.broadcast %cst_11 : f32 to vector<8x32xf32>
    %23 = arith.divf %22, %21 : vector<8x32xf32>
    %24 = arith.mulf %9, %23 : vector<8x32xf32>
    %25 = vector.shape_cast %24 : vector<8x32xf32> to vector<8x1x32xf32>
    %26 = vector.broadcast %25 : vector<8x1x32xf32> to vector<8x8x32xf32>
    %27 = arith.mulf %26, %5 : vector<8x8x32xf32>
    %cst_12 = arith.constant dense<0.000000e+00> : vector<8x8xf32>
    %28 = vector.multi_reduction <add>, %27, %cst_12 [2] : vector<8x8x32xf32> to vector<8x8xf32>
    %cst_13 = arith.constant 1.000000e+00 : f32
    %29 = vector.broadcast %cst_13 : f32 to vector<8x1xf32>
    %30 = arith.subf %29, %16 : vector<8x1xf32>
    %31 = vector.broadcast %30 : vector<8x1xf32> to vector<8x8xf32>
    %32 = arith.addf %31, %28 : vector<8x8xf32>
    %cst_14 = arith.constant 0.000000e+00 : f32
    %33 = vector.broadcast %cst_14 : f32 to vector<8x8xf32>
    %34 = arith.maximumf %32, %33 : vector<8x8xf32>
    %c8_i32 = arith.constant 8 : i32
    %35 = arith.muli %arg0, %c8_i32 : i32
    %36 = tpu.iota {dimensions = array<i32: 0>} : vector<8x8xi32>
    %37 = vector.broadcast %35 : i32 to vector<8x8xi32>
    %38 = arith.addi %37, %36 : vector<8x8xi32>
    %c2_i32 = arith.constant 2 : i32
    %39 = vector.broadcast %c2_i32 : i32 to vector<8x8xi32>
    %40 = arith.cmpi slt, %38, %39 : vector<8x8xi32>
    %cst_15 = arith.constant 0.000000e+00 : f32
    %41 = vector.broadcast %cst_15 : f32 to vector<8x8xf32>
    %42 = arith.select %40, %34, %41 : vector<8x8xi1>, vector<8x8xf32>
    %c0_16 = arith.constant 0 : index
    %c0_17 = arith.constant 0 : index
    %43 = memref.load %arg5[%c0_16, %c0_17] : memref<1x1xf32, #tpu.memory_space<smem>>
    %44 = vector.shape_cast %42 : vector<8x8xf32> to vector<1x8x8xf32>
    %cst_18 = arith.constant dense<0.000000e+00> : vector<1xf32>
    %45 = vector.multi_reduction <add>, %44, %cst_18 [1, 2] : vector<1x8x8xf32> to vector<1xf32>
    %46 = vector.shape_cast %45 : vector<1xf32> to vector<1x1x1xf32>
    %47 = vector.extract %46[0, 0, 0] : f32 from vector<1x1x1xf32>
    %48 = arith.addf %43, %47 : f32
    %c0_19 = arith.constant 0 : index
    %c0_20 = arith.constant 0 : index
    %49 = memref.load %arg5[%c0_19, %c0_20] : memref<1x1xf32, #tpu.memory_space<smem>>
    memref.store %48, %arg5[%c0_19, %c0_20] : memref<1x1xf32, #tpu.memory_space<smem>>
    return
  }
  func.func @transform_0(%arg0: i32) -> (i32, i32) {
    %c0_i32 = arith.constant 0 : i32
    %c0_i32_0 = arith.constant 0 : i32
    return %arg0, %c0_i32 : i32, i32
  }
  func.func @transform_1(%arg0: i32) -> (i32, i32) {
    %c0_i32 = arith.constant 0 : i32
    %c0_i32_0 = arith.constant 0 : i32
    return %arg0, %c0_i32 : i32, i32
  }
  func.func @transform_2(%arg0: i32) -> (i32, i32, i32) {
    %c0_i32 = arith.constant 0 : i32
    %c0_i32_0 = arith.constant 0 : i32
    %c0_i32_1 = arith.constant 0 : i32
    return %arg0, %c0_i32, %c0_i32_0 : i32, i32, i32
  }
  func.func @transform_3(%arg0: i32) -> (i32, i32) {
    %c0_i32 = arith.constant 0 : i32
    %c0_i32_0 = arith.constant 0 : i32
    %c0_i32_1 = arith.constant 0 : i32
    return %c0_i32, %c0_i32_0 : i32, i32
  }
  func.func @transform_4(%arg0: i32) -> (i32, i32) {
    %c0_i32 = arith.constant 0 : i32
    %c0_i32_0 = arith.constant 0 : i32
    %c0_i32_1 = arith.constant 0 : i32
    return %c0_i32, %c0_i32_0 : i32, i32
  }
}

</mosaic_0001>

<llo_original>
// kernel: tpu_custom_call.1
$region0: #{tpu_custom_call.1}
  #allocation0 [shape = 'u32[]', space=smem, size = 0x4, offset = 0x4, fixed_abs, tag = 'smem constant byte address 0x4 - core index']
  #allocation1 [shape = 'u32[144,128]{1,0:T(1,128)}', space=vmem, size = 0x12000, scoped, tag = 'internal scratch']
  %s0 = inlined_call_operand.hbm [shape: f32[8,32], index: 0, kind: input, shape index: {}]
  %s1 = inlined_call_operand.hbm [shape: f32[8,32], index: 1, kind: input, shape index: {}]
  %s2 = inlined_call_operand.hbm [shape: f32[8,8,32], index: 2, kind: input, shape index: {}]
  %s3 = inlined_call_operand.vmem [shape: f32[4,32], index: 3, kind: input, shape index: {}]
  %s4 = inlined_call_operand.hbm [shape: f32[1,1], index: 4, kind: output, shape index: {}]
  %s5 = sld [smem:[#allocation0]]
  $region42: #{tpu_custom_call.1} parent=0
    _
  %s7 = ssub.s32 1, %s5
  %s8 = scalar_select 0, %s7, %s5
  $region1: #{tpu_custom_call.1} parent=0
    #allocation2 [shape = 'u8[4096]{0}', space=vmem, size = 0x1000, scoped, tag = 'input window, operand 0, single buffered']
    #allocation3 [shape = 's32[1]{0}', space=sflag, size = 0x4, scoped, tag = 'scoped memory for tpu_custom_call.1']
    #allocation4 [shape = 's32[1]{0}', space=sflag, size = 0x4, scoped, tag = 'scoped memory for tpu_custom_call.1']
    #allocation5 [shape = 'u8[4096]{0}', space=vmem, size = 0x1000, scoped, tag = 'input window, operand 1, single buffered']
    #allocation6 [shape = 's32[1]{0}', space=sflag, size = 0x4, scoped, tag = 'scoped memory for tpu_custom_call.1']
    #allocation7 [shape = 'u8[32768]{0}', space=vmem, size = 0x8000, scoped, tag = 'input window, operand 2, single buffered']
    #allocation8 [shape = 'u8[512]{0}', space=smem, size = 0x200, scoped, tag = 'output window, operand 0, single buffered']
    %9 = vsyncpa [#allocation3], 0
    %10 = vsyncpa [#allocation6], 0
    %11 = vsyncpa [#allocation4], 0
    // Predicated region
    $region2: #{tpu_custom_call.1} parent=1 // pred_check
      _
    $region3: #{tpu_custom_call.1} parent=1 // pred_check_branch
      %13 = sbr.rel (0) target = $region5
    $region4: #{tpu_custom_call.1} parent=1 // pred_region
      %s15 = ssub.s32 128, 128
      %16 = vsyncadd [#allocation3], %s15
      %s18 = sshll.u32 [#allocation2], 4
      %s19 = int_to_ptr.vmem [resolvable:$true] %s18
      %21 = dma.hbm_to_vmem [thread:$0]  %s0, 128, %s19, [#allocation3]
    $region5: #{tpu_custom_call.1} parent=1 // pred_fallthru
      _
    // Predicated region
    $region6: #{tpu_custom_call.1} parent=1 // pred_check
      _
    $region7: #{tpu_custom_call.1} parent=1 // pred_check_branch
      %23 = sbr.rel (0) target = $region9
    $region8: #{tpu_custom_call.1} parent=1 // pred_region
      %s25 = ssub.s32 128, 128
      %26 = vsyncadd [#allocation6], %s25
      %s28 = sshll.u32 [#allocation5], 4
      %s29 = int_to_ptr.vmem [resolvable:$true] %s28
      %31 = dma.hbm_to_vmem [thread:$0]  %s1, 128, %s29, [#allocation6]
    $region9: #{tpu_custom_call.1} parent=1 // pred_fallthru
      _
    // Predicated region
    $region10: #{tpu_custom_call.1} parent=1 // pred_check
      _
    $region11: #{tpu_custom_call.1} parent=1 // pred_check_branch
      %33 = sbr.rel (0) target = $region13
    $region12: #{tpu_custom_call.1} parent=1 // pred_region
      %s35 = ssub.s32 1024, 1024
      %36 = vsyncadd [#allocation6], %s35
      %s37 = sshll.u32 [#allocation7], 4
      %s38 = int_to_ptr.vmem [resolvable:$true] %s37
      %43 = dma.hbm_to_vmem [thread:$0]  %s2, 1024, %s38, [#allocation6], 128, 128, 8
    $region13: #{tpu_custom_call.1} parent=1 // pred_fallthru
      _
    // Predicated region
    $region14: #{tpu_custom_call.1} parent=1 // pred_check
      _
    $region15: #{tpu_custom_call.1} parent=1 // pred_check_branch
      %45 = sbr.rel (0) target = $region17
    $region16: #{tpu_custom_call.1} parent=1 // pred_region
      _
    $region17: #{tpu_custom_call.1} parent=1 // pred_fallthru
      _
    // Predicated region
    $region18: #{tpu_custom_call.1} parent=1 // pred_check
      _
    $region19: #{tpu_custom_call.1} parent=1 // pred_check_branch
      %47 = sbr.rel (0) target = $region21
    $region20: #{tpu_custom_call.1} parent=1 // pred_region
      %48 = dma.done [#allocation3], 128
    $region21: #{tpu_custom_call.1} parent=1 // pred_fallthru
      _
    // Predicated region
    $region22: #{tpu_custom_call.1} parent=1 // pred_check
      _
    $region23: #{tpu_custom_call.1} parent=1 // pred_check_branch
      %50 = sbr.rel (0) target = $region25
    $region24: #{tpu_custom_call.1} parent=1 // pred_region
      %51 = dma.done [#allocation6], 128
    $region25: #{tpu_custom_call.1} parent=1 // pred_fallthru
      _
    // Predicated region
    $region26: #{tpu_custom_call.1} parent=1 // pred_check
      _
    $region27: #{tpu_custom_call.1} parent=1 // pred_check_branch
      %53 = sbr.rel (0) target = $region29
    $region28: #{tpu_custom_call.1} parent=1 // pred_region
      %54 = dma.done [#allocation6], 1024
    $region29: #{tpu_custom_call.1} parent=1 // pred_fallthru
      _
    %p55 = scmp.eq.s32.totalorder 0, 0
    // Predicated region
    $region30: #{tpu_custom_call.1} parent=1 // pred_check
      %p56 = pneg %p55
    $region31: #{tpu_custom_call.1} parent=1 // pred_check_branch
      %58 = sbr.rel (%p56) target = $region33
    $region32: #{tpu_custom_call.1} parent=1 // pred_region
      %v59 = vld [vmem:[%s3] sm:$0xf]
      %vm60 = vcmask 261120
      %v62 = vsel %vm60, %v59, 0
      %64 = vmatprep.subr.mxu0 0.0
      %65 = vmatpush1.xpose.msra.mxu0 0.0
      %66 = vmatprep.subr.mxu0 0.0
      %67 = vmatpush1.xpose.msra.mxu0 0.0
      %68 = vmatprep.subr.mxu0 0.0
      %69 = vmatpush1.xpose.msra.mxu0 0.0
      %70 = vmatprep.subr.mxu0 0.0
      %71 = vmatpush1.xpose.msra.mxu0 0.0
      %72 = vmatprep.subr.mxu0 0.0
      %73 = vmatpush1.xpose.msra.mxu0 0.0
      %74 = vmatprep.subr.mxu0 0.0
      %75 = vmatpush1.xpose.msra.mxu0 0.0
      %76 = vmatprep.subr.mxu0 0.0
      %77 = vmatpush1.xpose.msra.mxu0 0.0
      %78 = vmatprep.subr.mxu0 0.0
      %79 = vmatpush1.xpose.msra.mxu0 0.0
      %80 = vmatprep.subr.mxu0 0.0
      %81 = vmatpush1.xpose.msra.mxu0 0.0
      %82 = vmatprep.subr.mxu0 0.0
      %83 = vmatpush1.xpose.msra.mxu0 0.0
      %84 = vmatprep.subr.mxu0 0.0
      %85 = vmatpush1.xpose.msra.mxu0 0.0
      %86 = vmatprep.subr.mxu0 0.0
      %87 = vmatpush1.xpose.msra.mxu0 0.0
      %88 = vmatprep.subr.mxu0 0.0
      %89 = vmatpush1.xpose.msra.mxu0 0.0
      %90 = vmatprep.subr.mxu0 0.0
      %91 = vmatpush1.xpose.msra.mxu0 0.0
      %92 = vmatprep.subr.mxu0 0.0
      %93 = vmatpush1.xpose.msra.mxu0 0.0
      %94 = vmatprep.subr.mxu0 0.0
      %95 = vmatpush1.xpose.msra.mxu0 %v62
      %96 = vmatprep.subr.mxu0 0.0
      %97 = vmatpush2.xpose.msra.mxu0 0.0
      %98 = vmatprep.subr.mxu0 0.0
      %99 = vmatpush2.xpose.msra.mxu0 0.0
      %100 = vmatprep.subr.mxu0 0.0
      %101 = vmatpush2.xpose.msra.mxu0 0.0
      %102 = vmatprep.subr.mxu0 0.0
      %103 = vmatpush2.xpose.msra.mxu0 0.0
      %104 = vmatprep.subr.mxu0 0.0
      %105 = vmatpush2.xpose.msra.mxu0 0.0
      %106 = vmatprep.subr.mxu0 0.0
      %107 = vmatpush2.xpose.msra.mxu0 0.0
      %108 = vmatprep.subr.mxu0 0.0
      %109 = vmatpush2.xpose.msra.mxu0 0.0
      %110 = vmatprep.subr.mxu0 0.0
      %111 = vmatpush2.xpose.msra.mxu0 0.0
      %112 = vmatprep.subr.mxu0 0.0
      %113 = vmatpush2.xpose.msra.mxu0 0.0
      %114 = vmatprep.subr.mxu0 0.0
      %115 = vmatpush2.xpose.msra.mxu0 0.0
      %116 = vmatprep.subr.mxu0 0.0
      %117 = vmatpush2.xpose.msra.mxu0 0.0
      %118 = vmatprep.subr.mxu0 0.0
      %119 = vmatpush2.xpose.msra.mxu0 0.0
      %120 = vmatprep.subr.mxu0 0.0
      %121 = vmatpush2.xpose.msra.mxu0 0.0
      %122 = vmatprep.subr.mxu0 0.0
      %123 = vmatpush2.xpose.msra.mxu0 0.0
      %124 = vmatprep.subr.mxu0 0.0
      %125 = vmatpush2.xpose.msra.mxu0 0.0
      %126 = vmatprep.subr.mxu0 0.0
      %127 = vmatpush2.xpose.msra.mxu0 0.0
      %128 = vmatprep.mubr.f32.mxu0 0.0
      %129 = vmatmul.mubr.f32.gmra.mxu0 %v62
      %v130 = vpop.f32.mrf.mxu0
      %v131 = vadd.f32 0.0, %v130
      %v132 = vpop.f32.mrf.mxu0
      %133 = vdwg.mxu0
      %v134 = vlaneseq
      %v135 = vshrl.u32 %v134, 7
      %v136 = vlaneseq
      %v137 = vand.u32 %v136, 127
      %vm138 = vcmp.eq.s32.totalorder %v135, %v137
      %v139 = vsel %vm138, 1.0, 0.0
      %v140 = vsub.f32 %v131, %v139
      %v141 = vmul.f32 %v140, %v140
      %vm142 = vcmask 27648
      %v143 = vsel %vm142, %v141, 0.0
      %144 = vadd.xlane.f32.xlu0 %v143
      %v145 = vpop.xlane.xlu0 %144
      %v146 = vrot.slane %v145, 4
      %v147 = vadd.f32 %v145, %v146
      %v148 = vrot.slane %v147, 2
      %v149 = vadd.f32 %v147, %v148
      %v150 = vrot.slane %v149, 1
      %v151 = vadd.f32 %v149, %v150
      %s152 = vtos %v151
      %v153 = vstv %s152
      %v154 = vrsqrt.pop %v153
      %v155 = vmul.f32 %v153, %v154
      %vm156 = vcmp.eq.f32.partialorder %v153, inf
      %v157 = vsel %vm156, %v153, %v155
      %vm158 = vcmp.eq.f32.partialorder %v153, 0.0
      %v159 = vand.u32 %v153, 2147483648
      %v160 = vsel %vm158, %v159, %v157
      %s161 = vtos %v160
      %s162 = smul.f32 %s161, 10.0
      %s163 = scalar_lea.smem [#allocation8], 0
      %164 = sst [smem:[%s163]] %s162
    $region33: #{tpu_custom_call.1} parent=1 // pred_fallthru
      _
    %v165 = vld [vmem:[#allocation2] sm:$0xff]
    %v166 = vld [vmem:[#allocation5] sm:$0xff]
    %v167 = vld [vmem:[#allocation7] sm:$0xff]
    %v168 = vld [vmem:[#allocation7 + $0x8] sm:$0xff]
    %v169 = vld [vmem:[#allocation7 + $0x10] sm:$0xff]
    %v170 = vld [vmem:[#allocation7 + $0x18] sm:$0xff]
    %v171 = vld [vmem:[#allocation7 + $0x20] sm:$0xff]
    %v172 = vld [vmem:[#allocation7 + $0x28] sm:$0xff]
    %v173 = vld [vmem:[#allocation7 + $0x30] sm:$0xff]
    %v174 = vld [vmem:[#allocation7 + $0x38] sm:$0xff]
    %v175 = vand.u32 2147483647, %v165
    %v176 = vmax.f32 %v175, 1e-12
    %v177 = vrcp.pop %v176
    %v178 = vmul.f32 %v165, %v177
    %v179 = vand.u32 2147483647, %v166
    %v180 = vmax.f32 %v179, 1e-12
    %v181 = vrcp.pop %v180
    %v182 = vmul.f32 %v166, %v181
    %v183 = vmul.f32 %v178, %v182
    %vm184 = vcmask 261120
    %v185 = vsel %vm184, %v183, 0.0
    %186 = vadd.xlane.f32.xlu0 %v185
    %v187 = vpop.xlane.xlu0 %186
    %v188 = vmul.f32 %v167, %v167
    %v189 = vmul.f32 %v168, %v168
    %v190 = vmul.f32 %v169, %v169
    %v191 = vmul.f32 %v170, %v170
    %v192 = vmul.f32 %v171, %v171
    %v193 = vmul.f32 %v172, %v172
    %v194 = vmul.f32 %v173, %v173
    %v195 = vmul.f32 %v174, %v174
    %v196 = vsel %vm184, %v188, 0.0
    %v197 = vrot.slane %v196, 4
    %v198 = vadd.f32 %v196, %v197
    %v199 = vrot.slane %v198, 2
    %v200 = vadd.f32 %v198, %v199
    %v201 = vrot.slane %v200, 1
    %v202 = vadd.f32 %v200, %v201
    %v203 = vsel %vm184, %v189, 0.0
    %v204 = vrot.slane %v203, 4
    %v205 = vadd.f32 %v203, %v204
    %v206 = vrot.slane %v205, 2
    %v207 = vadd.f32 %v205, %v206
    %v208 = vrot.slane %v207, 1
    %v209 = vadd.f32 %v207, %v208
    %v210 = vsel %vm184, %v190, 0.0
    %v211 = vrot.slane %v210, 4
    %v212 = vadd.f32 %v210, %v211
    %v213 = vrot.slane %v212, 2
    %v214 = vadd.f32 %v212, %v213
    %v215 = vrot.slane %v214, 1
    %v216 = vadd.f32 %v214, %v215
    %v217 = vsel %vm184, %v191, 0.0
    %v218 = vrot.slane %v217, 4
    %v219 = vadd.f32 %v217, %v218
    %v220 = vrot.slane %v219, 2
    %v221 = vadd.f32 %v219, %v220
    %v222 = vrot.slane %v221, 1
    %v223 = vadd.f32 %v221, %v222
    %v224 = vsel %vm184, %v192, 0.0
    %v225 = vrot.slane %v224, 4
    %v226 = vadd.f32 %v224, %v225
    %v227 = vrot.slane %v226, 2
    %v228 = vadd.f32 %v226, %v227
    %v229 = vrot.slane %v228, 1
    %v230 = vadd.f32 %v228, %v229
    %v231 = vsel %vm184, %v193, 0.0
    %v232 = vrot.slane %v231, 4
    %v233 = vadd.f32 %v231, %v232
    %v234 = vrot.slane %v233, 2
    %v235 = vadd.f32 %v233, %v234
    %v236 = vrot.slane %v235, 1
    %v237 = vadd.f32 %v235, %v236
    %v238 = vsel %vm184, %v194, 0.0
    %v239 = vrot.slane %v238, 4
    %v240 = vadd.f32 %v238, %v239
    %v241 = vrot.slane %v240, 2
    %v242 = vadd.f32 %v240, %v241
    %v243 = vrot.slane %v242, 1
    %v244 = vadd.f32 %v242, %v243
    %v245 = vsel %vm184, %v195, 0.0
    %v246 = vrot.slane %v245, 4
    %v247 = vadd.f32 %v245, %v246
    %v248 = vrot.slane %v247, 2
    %v249 = vadd.f32 %v247, %v248
    %v250 = vrot.slane %v249, 1
    %v251 = vadd.f32 %v249, %v250
    %v252 = vrsqrt.pop %v202
    %v253 = vmul.f32 %v202, %v252
    %vm254 = vcmp.eq.f32.partialorder %v202, inf
    %v255 = vsel %vm254, %v202, %v253
    %vm256 = vcmp.eq.f32.partialorder %v202, 0.0
    %v257 = vand.u32 %v202, 2147483648
    %v258 = vsel %vm256, %v257, %v255
    %v259 = vrsqrt.pop %v209
    %v260 = vmul.f32 %v209, %v259
    %vm261 = vcmp.eq.f32.partialorder %v209, inf
    %v262 = vsel %vm261, %v209, %v260
    %vm263 = vcmp.eq.f32.partialorder %v209, 0.0
    %v264 = vand.u32 %v209, 2147483648
    %v265 = vsel %vm263, %v264, %v262
    %v266 = vrsqrt.pop %v216
    %v267 = vmul.f32 %v216, %v266
    %vm268 = vcmp.eq.f32.partialorder %v216, inf
    %v269 = vsel %vm268, %v216, %v267
    %vm270 = vcmp.eq.f32.partialorder %v216, 0.0
    %v271 = vand.u32 %v216, 2147483648
    %v272 = vsel %vm270, %v271, %v269
    %v273 = vrsqrt.pop %v223
    %v274 = vmul.f32 %v223, %v273
    %vm275 = vcmp.eq.f32.partialorder %v223, inf
    %v276 = vsel %vm275, %v223, %v274
    %vm277 = vcmp.eq.f32.partialorder %v223, 0.0
    %v278 = vand.u32 %v223, 2147483648
    %v279 = vsel %vm277, %v278, %v276
    %v280 = vrsqrt.pop %v230
    %v281 = vmul.f32 %v230, %v280
    %vm282 = vcmp.eq.f32.partialorder %v230, inf
    %v283 = vsel %vm282, %v230, %v281
    %vm284 = vcmp.eq.f32.partialorder %v230, 0.0
    %v285 = vand.u32 %v230, 2147483648
    %v286 = vsel %vm284, %v285, %v283
    %v287 = vrsqrt.pop %v237
    %v288 = vmul.f32 %v237, %v287
    %vm289 = vcmp.eq.f32.partialorder %v237, inf
    %v290 = vsel %vm289, %v237, %v288
    %vm291 = vcmp.eq.f32.partialorder %v237, 0.0
    %v292 = vand.u32 %v237, 2147483648
    %v293 = vsel %vm291, %v292, %v290
    %v294 = vrsqrt.pop %v244
    %v295 = vmul.f32 %v244, %v294
    %vm296 = vcmp.eq.f32.partialorder %v244, inf
    %v297 = vsel %vm296, %v244, %v295
    %vm298 = vcmp.eq.f32.partialorder %v244, 0.0
    %v299 = vand.u32 %v244, 2147483648
    %v300 = vsel %vm298, %v299, %v297
    %v301 = vrsqrt.pop %v251
    %v302 = vmul.f32 %v251, %v301
    %vm303 = vcmp.eq.f32.partialorder %v251, inf
    %v304 = vsel %vm303, %v251, %v302
    %vm305 = vcmp.eq.f32.partialorder %v251, 0.0
    %v306 = vand.u32 %v251, 2147483648
    %v307 = vsel %vm305, %v306, %v304
    %v308 = vmax.f32 %v258, 1e-12
    %v309 = vmax.f32 %v265, 1e-12
    %v310 = vmax.f32 %v272, 1e-12
    %v311 = vmax.f32 %v279, 1e-12
    %v312 = vmax.f32 %v286, 1e-12
    %v313 = vmax.f32 %v293, 1e-12
    %v314 = vmax.f32 %v300, 1e-12
    %v315 = vmax.f32 %v307, 1e-12
    %v316 = vrcp.pop %v308
    %v317 = vmul.f32 1.0, %v316
    %v318 = vrcp.pop %v309
    %v319 = vmul.f32 1.0, %v318
    %v320 = vrcp.pop %v310
    %v321 = vmul.f32 1.0, %v320
    %v322 = vrcp.pop %v311
    %v323 = vmul.f32 1.0, %v322
    %v324 = vrcp.pop %v312
    %v325 = vmul.f32 1.0, %v324
    %v326 = vrcp.pop %v313
    %v327 = vmul.f32 1.0, %v326
    %v328 = vrcp.pop %v314
    %v329 = vmul.f32 1.0, %v328
    %v330 = vrcp.pop %v315
    %v331 = vmul.f32 1.0, %v330
    %vm340 = vcmask 1041409
    %v341 = vsel %vm340, %v319, %v317
    %vm342 = vcmask 1042434
    %v343 = vsel %vm342, %v321, %v341
    %vm344 = vcmask 1043459
    %v345 = vsel %vm344, %v323, %v343
    %vm346 = vcmask 1044484
    %v347 = vsel %vm346, %v325, %v345
    %vm348 = vcmask 1045509
    %v349 = vsel %vm348, %v327, %v347
    %vm350 = vcmask 1046534
    %v351 = vsel %vm350, %v329, %v349
    %vm352 = vcmask 1047559
    %v353 = vsel %vm352, %v331, %v351
    %v355 = vmul.f32 %v178, %v353
    %v357 = vcombine.high %v355, %v355
    %v359 = vunpack.c.l.s4 1966171168
    %v360 = vunpack.c.0.s8 %v359
    %v361 = vlaneseq
    %v362 = vshrl.u32 %v361, 7
    %v363 = vsub.s32 %v360, %v362
    %v364 = vrot.slane %v355, %v363
    %v366 = vunpack.c.l.s4 1966171168
    %v367 = vunpack.c.0.s8 %v366
    %v368 = vlaneseq
    %v369 = vshrl.u32 %v368, 7
    %v370 = vsub.s32 %v367, %v369
    %v371 = vrot.slane %v357, %v370
    %v372 = vcombine.high %v364, %v364
    %v373 = vcombine.high %v371, %v371
    %v375 = vunpack.c.l.s4 1966171168
    %v376 = vunpack.c.0.s8 %v375
    %v377 = vlaneseq
    %v378 = vshrl.u32 %v377, 7
    %v379 = vsub.s32 %v376, %v378
    %v380 = vrot.slane %v364, %v379
    %v382 = vunpack.c.l.s4 1966171168
    %v383 = vunpack.c.0.s8 %v382
    %v384 = vlaneseq
    %v385 = vshrl.u32 %v384, 7
    %v386 = vsub.s32 %v383, %v385
    %v387 = vrot.slane %v371, %v386
    %v389 = vunpack.c.l.s4 1966171168
    %v390 = vunpack.c.0.s8 %v389
    %v391 = vlaneseq
    %v392 = vshrl.u32 %v391, 7
    %v393 = vsub.s32 %v390, %v392
    %v394 = vrot.slane %v372, %v393
    %v396 = vunpack.c.l.s4 1966171168
    %v397 = vunpack.c.0.s8 %v396
    %v398 = vlaneseq
    %v399 = vshrl.u32 %v398, 7
    %v400 = vsub.s32 %v397, %v399
    %v401 = vrot.slane %v373, %v400
    %v402 = vcombine.high %v380, %v380
    %v403 = vcombine.high %v387, %v387
    %v404 = vcombine.high %v394, %v394
    %v405 = vcombine.high %v401, %v401
    %v406 = vlaneseq
    %v407 = vshrl.u32 %v406, 7
    %v408 = vsub.s32 0, %v407
    %v409 = vrot.slane %v380, %v408
    %v410 = vlaneseq
    %v411 = vshrl.u32 %v410, 7
    %v412 = vsub.s32 0, %v411
    %v413 = vrot.slane %v394, %v412
    %v414 = vlaneseq
    %v415 = vshrl.u32 %v414, 7
    %v416 = vsub.s32 0, %v415
    %v417 = vrot.slane %v402, %v416
    %v418 = vlaneseq
    %v419 = vshrl.u32 %v418, 7
    %v420 = vsub.s32 0, %v419
    %v421 = vrot.slane %v404, %v420
    %v422 = vlaneseq
    %v423 = vshrl.u32 %v422, 7
    %v424 = vsub.s32 0, %v423
    %v425 = vrot.slane %v387, %v424
    %v426 = vlaneseq
    %v427 = vshrl.u32 %v426, 7
    %v428 = vsub.s32 0, %v427
    %v429 = vrot.slane %v401, %v428
    %v430 = vlaneseq
    %v431 = vshrl.u32 %v430, 7
    %v432 = vsub.s32 0, %v431
    %v433 = vrot.slane %v403, %v432
    %v434 = vlaneseq
    %v435 = vshrl.u32 %v434, 7
    %v436 = vsub.s32 0, %v435
    %v437 = vrot.slane %v405, %v436
    %v446 = vmul.f32 %v409, %v167
    %v447 = vmul.f32 %v413, %v168
    %v448 = vmul.f32 %v417, %v169
    %v449 = vmul.f32 %v421, %v170
    %v450 = vmul.f32 %v425, %v171
    %v451 = vmul.f32 %v429, %v172
    %v452 = vmul.f32 %v433, %v173
    %v453 = vmul.f32 %v437, %v174
    %v454 = vsel %vm184, %v446, 0.0
    %455 = vadd.xlane.f32.xlu0 %v454
    %v456 = vpop.xlane.xlu0 %455
    %v457 = vsel %vm184, %v447, 0.0
    %458 = vadd.xlane.f32.xlu0 %v457
    %v459 = vpop.xlane.xlu0 %458
    %v460 = vsel %vm184, %v448, 0.0
    %461 = vadd.xlane.f32.xlu0 %v460
    %v462 = vpop.xlane.xlu0 %461
    %v463 = vsel %vm184, %v449, 0.0
    %464 = vadd.xlane.f32.xlu0 %v463
    %v465 = vpop.xlane.xlu0 %464
    %v466 = vsel %vm184, %v450, 0.0
    %467 = vadd.xlane.f32.xlu0 %v466
    %v468 = vpop.xlane.xlu0 %467
    %v469 = vsel %vm184, %v451, 0.0
    %470 = vadd.xlane.f32.xlu0 %v469
    %v471 = vpop.xlane.xlu0 %470
    %v472 = vsel %vm184, %v452, 0.0
    %473 = vadd.xlane.f32.xlu0 %v472
    %v474 = vpop.xlane.xlu0 %473
    %v475 = vsel %vm184, %v453, 0.0
    %476 = vadd.xlane.f32.xlu0 %v475
    %v477 = vpop.xlane.xlu0 %476
    %v478 = vsub.f32 1.0, %v187
    %v487 = vlaneseq
    %v488 = vand.u32 %v487, 127
    %v489 = vlaneseq
    %v490 = vshrl.u32 %v489, 7
    %v491 = vsub.s32 %v488, %v490
    %v492 = vrot.slane %v456, %v491
    %v493 = vlaneseq
    %v494 = vshrl.u32 %v493, 7
    %v495 = vsub.s32 %v488, %v494
    %v496 = vrot.slane %v459, %v495
    %v497 = vlaneseq
    %v498 = vshrl.u32 %v497, 7
    %v499 = vsub.s32 %v488, %v498
    %v500 = vrot.slane %v462, %v499
    %v501 = vlaneseq
    %v502 = vshrl.u32 %v501, 7
    %v503 = vsub.s32 %v488, %v502
    %v504 = vrot.slane %v465, %v503
    %v505 = vlaneseq
    %v506 = vshrl.u32 %v505, 7
    %v507 = vsub.s32 %v488, %v506
    %v508 = vrot.slane %v468, %v507
    %v509 = vlaneseq
    %v510 = vshrl.u32 %v509, 7
    %v511 = vsub.s32 %v488, %v510
    %v512 = vrot.slane %v471, %v511
    %v513 = vlaneseq
    %v514 = vshrl.u32 %v513, 7
    %v515 = vsub.s32 %v488, %v514
    %v516 = vrot.slane %v474, %v515
    %v517 = vlaneseq
    %v518 = vshrl.u32 %v517, 7
    %v519 = vsub.s32 %v488, %v518
    %v520 = vrot.slane %v477, %v519
    %v521 = vsel %vm340, %v496, %v492
    %v522 = vsel %vm342, %v500, %v521
    %v523 = vsel %vm344, %v504, %v522
    %v524 = vsel %vm346, %v508, %v523
    %v525 = vsel %vm348, %v512, %v524
    %v526 = vsel %vm350, %v516, %v525
    %v527 = vsel %vm352, %v520, %v526
    %v529 = vadd.f32 %v478, %v527
    %v530 = vmax.f32 %v529, 0.0
    %s531 = smul.u32 0, 8
    %v532 = vlaneseq
    %v533 = vshrl.u32 %v532, 7
    %v534 = vstv %s531
    %v535 = vadd.s32 %v534, %v533
    %vm536 = vcmp.lt.s32.totalorder %v535, 2
    %v537 = vsel %vm536, %v530, 0.0
    %s538 = sld [smem:[#allocation8]]
    %vm539 = vcmask 64512
    %v540 = vsel %vm539, %v537, 0.0
    %541 = vadd.xlane.f32.xlu0 %v540
    %v542 = vpop.xlane.xlu0 %541
    %v543 = vrot.slane %v542, 4
    %v544 = vadd.f32 %v542, %v543
    %v545 = vrot.slane %v544, 2
    %v546 = vadd.f32 %v544, %v545
    %v547 = vrot.slane %v546, 1
    %v548 = vadd.f32 %v546, %v547
    %s549 = vtos %v548
    %s550 = sadd.f32 %s538, %s549
    %s551 = scalar_lea.smem [#allocation8], 0
    %552 = sst [smem:[%s551]] %s550
    // Predicated region
    $region34: #{tpu_custom_call.1} parent=1 // pred_check
      _
    $region35: #{tpu_custom_call.1} parent=1 // pred_check_branch
      %554 = sbr.rel (0) target = $region37
    $region36: #{tpu_custom_call.1} parent=1 // pred_region
      %s556 = ssub.s32 16, 16
      %557 = vsyncadd [#allocation4], %s556
      %560 = dma.smem_to_hbm [#allocation8], 16, %s4, [#allocation4]
    $region37: #{tpu_custom_call.1} parent=1 // pred_fallthru
      _
    // Predicated region
    $region38: #{tpu_custom_call.1} parent=1 // pred_check
      _
    $region39: #{tpu_custom_call.1} parent=1 // pred_check_branch
      %562 = sbr.rel (0) target = $region41
    $region40: #{tpu_custom_call.1} parent=1 // pred_region
      %563 = dma.done [#allocation4], 16
    $region41: #{tpu_custom_call.1} parent=1 // pred_fallthru
      _
    %564 = sfence
    %565 = vsyncpa [#allocation3], 1
    %566 = vsyncpa [#allocation6], 1
    %567 = vsyncpa [#allocation4], 1

</llo_original>
